<compile_context>
chip_gen: v6e
topology: v6e:2x2x1
jax: 0.10.0
libtpu: 0.0.40
codegen_flags: <defaults>
</compile_context>

<pallas_src>
import functools

import jax
import jax.numpy as jnp
import numpy as np
from jax.experimental import pallas as pl
from jax.experimental.pallas import tpu as pltpu

EPS = 1e-6
_LANES = 128
_TARGET_BLOCK_ELEMS = 1 << 20  # ~4 MiB of f32 temps per grid step


def _cdiv(a, b):
    return -(-a // b)


def _round_up(a, b):
    return _cdiv(a, b) * b


@functools.lru_cache(maxsize=None)
def _chip_info():
    """Generation-aware plumbing; every query has a safe fallback."""
    kind = ""
    try:
        kind = jax.devices()[0].device_kind.lower()
    except Exception:
        pass
    num_cores = 2 if "v7" in kind else 1          # TensorCores per chip
    is_v5 = "v5" in kind
    phys_vmem = None
    try:
        phys_vmem = int(getattr(pltpu.get_tpu_info(), "vmem_capacity_bytes", 0)) or None
    except Exception:
        phys_vmem = None
    if phys_vmem is None:
        # v5e / v6e have 128 MiB physical VMEM per TC; v7x has 64 MiB.
        phys_vmem = (128 << 20) if ("v5" in kind or "v6" in kind) else (64 << 20)
    # v5e's MXU is bf16-native (f32 is multi-pass emulated); v6e/v7x keep f32.
    mxu_dtype = jnp.bfloat16 if is_v5 else jnp.float32
    return {"num_cores": num_cores, "phys_vmem": phys_vmem, "mxu_dtype": mxu_dtype}


@functools.lru_cache(maxsize=None)
def _segment_matrix_np(width, cg):
    """[width, width] block-diagonal ones (block size cg), built host-side."""
    lane = np.arange(width)
    return np.asarray(lane[:, None] // cg == lane[None, :] // cg, dtype=np.float32)


# --------------------------------------------------------------------------
# Kernels
# --------------------------------------------------------------------------
def _l2norm_reduce_kernel(x_ref, o_ref):
    """Fallback for large/awkward CG: XLU lane reduce."""
    x = x_ref[...].astype(jnp.float32)                      # [tm, CG]
    sq = jnp.sum(x * x, axis=-1, keepdims=True)             # [tm, 1]
    inv = pl.reciprocal(jnp.sqrt(sq) + EPS, approx=True)    # EUP, no VALU divide
    o_ref[...] = (x * inv).astype(o_ref.dtype)


def _l2norm_matmul_kernel(x_ref, seg_ref, o_ref, *, mxu_dtype):
    """MXU path: seg is [W,W] block-diagonal (block size CG).  The dot yields,
    for every lane, the sum of squares of its own segment, already broadcast
    across that segment's lanes (no XLU reduce, no [tm,1] broadcast)."""
    x = x_ref[...].astype(jnp.float32)                       # [tm, W]
    xx = x * x
    sq = jnp.dot(xx.astype(mxu_dtype), seg_ref[...].astype(mxu_dtype),
                 preferred_element_type=jnp.float32)         # [tm, W]
    inv = pl.reciprocal(jnp.sqrt(sq) + EPS, approx=True)
    o_ref[...] = (x * inv).astype(o_ref.dtype)


# --------------------------------------------------------------------------
# Tiling / launch helpers
# --------------------------------------------------------------------------
def _sublane_multiple(itemsize):
    # Native sublane packing: 8 rows (f32), 16 (bf16), 32 (int8/fp8).
    return 8 * max(1, 4 // itemsize)


def _pick_tile_rows(n_rows, width, itemsize, num_cores):
    sub = _sublane_multiple(itemsize)
    t = max(sub, (_TARGET_BLOCK_ELEMS // max(width, 1)) // sub * sub)
    if n_rows <= t:
        # Whole problem fits in one block.
        if num_cores <= 1 or n_rows <= 2 * sub:
            return n_rows
        # 2-TC chips (v7x): split so both cores get a "parallel" grid step.
        per = _round_up(_cdiv(n_rows, num_cores), sub)
        return min(t, per)
    # Many blocks: on multi-core chips nudge the tile so the grid length is a
    # multiple of the core count (avoid e.g. a 2/1 split with one idle core).
    if num_cores > 1:
        g = _cdiv(n_rows, t)
        if g % num_cores:
            g2 = _round_up(g, num_cores)
            t2 = _round_up(_cdiv(n_rows, g2), sub)
            if t2 >= sub and _cdiv(n_rows, t2) % num_cores == 0:
                t = t2
    return t


def _vmem_limit_bytes(tile_rows, width, itemsize, phys_vmem):
    block_io = tile_rows * width * itemsize
    f32_tmp = tile_rows * width * 4
    # 2x double-buffered input + output, a few f32 compute temps, headroom.
    limit = 4 * block_io + 6 * f32_tmp + (2 << 20)
    limit = max(limit, 32 << 20)
    cap = max(phys_vmem - (16 << 20), 32 << 20)   # leave compiler scratch room
    return int(min(limit, cap))


def _run(x2d, kernel, extra_inputs, extra_specs, tile_rows, phys_vmem):
    rows, width = x2d.shape
    grid = (pl.cdiv(rows, tile_rows),)
    return pl.pallas_call(
        kernel,
        out_shape=jax.ShapeDtypeStruct((rows, width), x2d.dtype),
        grid_spec=pltpu.PrefetchScalarGridSpec(
            num_scalar_prefetch=0,
            grid=grid,
            in_specs=[pl.BlockSpec((tile_rows, width), lambda i: (i, 0))]
                     + list(extra_specs),
            out_specs=pl.BlockSpec((tile_rows, width), lambda i: (i, 0)),
        ),
        compiler_params=pltpu.CompilerParams(
            dimension_semantics=("parallel",),
            vmem_limit_bytes=_vmem_limit_bytes(
                tile_rows, width, x2d.dtype.itemsize, phys_vmem),
        ),
    )(x2d, *extra_inputs)


# --------------------------------------------------------------------------
# Public entry point
# --------------------------------------------------------------------------
def l2norm(x):
    """L2-normalize x along its last dim. Accepts [..., CG] (e.g. [B,K,CG] or [K,CG])."""
    orig_shape = x.shape
    cg = orig_shape[-1]
    x2d = x.reshape(-1, cg)
    rows = x2d.shape[0]
    itemsize = x2d.dtype.itemsize
    info = _chip_info()

    if cg < _LANES:
        # Packed lane-dense path (covers "awkward" CG like 40 as well):
        # fold F segments per row, width W = F*CG (<= 128).
        f = _LANES // cg
        w = f * cg
        rows_p = _round_up(rows, f)
        xp = x2d if rows_p == rows else jnp.pad(x2d, ((0, rows_p - rows), (0, 0)))
        xw = xp.reshape(rows_p // f, w)           # free row-major reshape
        seg = jnp.asarray(_segment_matrix_np(w, cg))
        t = _pick_tile_rows(rows_p // f, w, itemsize, info["num_cores"])
        seg_spec = pl.BlockSpec((w, w), lambda i: (0, 0))
        kernel = functools.partial(_l2norm_matmul_kernel, mxu_dtype=info["mxu_dtype"])
        out = _run(xw, kernel, (seg,), (seg_spec,), t, info["phys_vmem"])
        out = out.reshape(rows_p, cg)
        if rows_p != rows:
            out = out[:rows]
    elif cg % _LANES == 0 and cg <= 2 * _LANES:
        # Already lane-dense; move the reduce + broadcast off the XLU onto the
        # MXU (seg is all-ones [CG,CG]).  Kept to CG<=256 so MXU flops stay
        # well under the HBM time on every generation.
        seg = jnp.asarray(_segment_matrix_np(cg, cg))
        t = _pick_tile_rows(rows, cg, itemsize, info["num_cores"])
        seg_spec = pl.BlockSpec((cg, cg), lambda i: (0, 0))
        kernel = functools.partial(_l2norm_matmul_kernel, mxu_dtype=info["mxu_dtype"])
        out = _run(x2d, kernel, (seg,), (seg_spec,), t, info["phys_vmem"])
    else:
        # Large CG (or CG >= 128 not a multiple of 128): XLU lane reduce.
        t = _pick_tile_rows(rows, cg, itemsize, info["num_cores"])
        out = _run(x2d, _l2norm_reduce_kernel, (), (), t, info["phys_vmem"])

    return out.reshape(orig_shape)


def _reference(x):
    xf = x.astype(jnp.float32)
    norm = jnp.sqrt(jnp.sum(xf * xf, axis=-1, keepdims=True)) + EPS
    return (xf / norm).astype(x.dtype)


if __name__ == "__main__":
    key = jax.random.PRNGKey(0)
    k1, k2, k3, k4, k5 = jax.random.split(key, 5)
    # Tolerance absorbs approx-reciprocal (~1e-3) and, on v5e, bf16 MXU operands.
    TOL = dict(atol=3e-3, rtol=3e-3)

    # [B, K, CG] — lane-dense packed path (CG=32 -> 4 segments per 128 lanes).
    x1 = jax.random.normal(k1, (2, 8, 32), dtype=jnp.float32)
    y1 = l2norm(x1)
    jax.block_until_ready(y1)
    assert y1.shape == x1.shape and y1.dtype == x1.dtype
    assert jnp.allclose(y1, _reference(x1), **TOL)

    # [K, CG] 2-D path.
    x2 = jax.random.normal(k2, (8, 32), dtype=jnp.float32)
    y2 = l2norm(x2)
    jax.block_until_ready(y2)
    assert jnp.allclose(y2, _reference(x2), **TOL)

    # CG multiple of 128 (<=256) -> MXU reduce on the simple lane-dense path.
    x3 = jax.random.normal(k3, (3, 8, 256), dtype=jnp.float32)
    y3 = l2norm(x3)
    jax.block_until_ready(y3)
    assert jnp.allclose(y3, _reference(x3), **TOL)

    # Awkward CG (40) and rows not a multiple of F -> packed path with row
    # padding + output slice (120-wide stores instead of 40-wide).
    x4 = jax.random.normal(k4, (10, 40), dtype=jnp.float32)
    y4 = l2norm(x4)
    jax.block_until_ready(y4)
    assert jnp.allclose(y4, _reference(x4), **TOL)

    # Large CG -> XLU-reduce fallback path.
    x5 = jax.random.normal(k5, (2, 4, 640), dtype=jnp.float32)
    y5 = l2norm(x5)
    jax.block_until_ready(y5)
    assert jnp.allclose(y5, _reference(x5), **TOL)

    print("KERNEL_OK")
</pallas_src>

<mosaic_0001>
module attributes {stable_mosaic.version = 11 : i64} {
  func.func @_l2norm_matmul_kernel(%arg0: i32, %arg1: memref<4x128xf32, #tpu.memory_space<vmem>>, %arg2: memref<128x128xf32, #tpu.memory_space<vmem>>, %arg3: memref<4x128xf32, #tpu.memory_space<vmem>>) attributes {dimension_semantics = [#tpu.dimension_semantics<parallel>], iteration_bounds = array<i64: 1>, scalar_prefetch = 0 : i64, scratch_operands = 0 : i64, tpu.core_type = #tpu.core_type<tc>, window_params = [{transform_indices = @transform_0, window_bounds = array<i64: 4, 128>}, {pipeline_mode = #tpu.pipeline_mode<synchronous>, transform_indices = @transform_1, window_bounds = array<i64: 128, 128>}, {transform_indices = @transform_2, window_bounds = array<i64: 4, 128>}]} {
    %c0 = arith.constant 0 : index
    %c0_0 = arith.constant 0 : index
    %0 = vector.load %arg1[%c0, %c0_0] : memref<4x128xf32, #tpu.memory_space<vmem>>, vector<4x128xf32>
    %1 = arith.mulf %0, %0 : vector<4x128xf32>
    %c0_1 = arith.constant 0 : index
    %c0_2 = arith.constant 0 : index
    %2 = vector.load %arg2[%c0_1, %c0_2] : memref<128x128xf32, #tpu.memory_space<vmem>>, vector<128x128xf32>
    %cst = arith.constant dense<0.000000e+00> : vector<4x128xf32>
    %3 = tpu.matmul %1, %2, %cst {dimension_numbers = #tpu.dot_dimension_numbers<[1], [0], [0], [1], [0, 0, 1, 1], [], []>} : vector<4x128xf32>, vector<128x128xf32>, vector<4x128xf32> -> vector<4x128xf32>
    %4 = math.sqrt %3 : vector<4x128xf32>
    %cst_3 = arith.constant 9.99999997E-7 : f32
    %5 = vector.broadcast %cst_3 : f32 to vector<4x128xf32>
    %6 = arith.addf %4, %5 : vector<4x128xf32>
    %7 = tpu.reciprocal %6 {approx = true} : vector<4x128xf32> -> vector<4x128xf32>
    %8 = arith.mulf %0, %7 : vector<4x128xf32>
    %c0_4 = arith.constant 0 : index
    %c0_5 = arith.constant 0 : index
    %9 = vector.load %arg3[%c0_4, %c0_5] : memref<4x128xf32, #tpu.memory_space<vmem>>, vector<4x128xf32>
    tpu.vector_store %arg3[%c0_4, %c0_5], %8 {strides = array<i32>} : memref<4x128xf32, #tpu.memory_space<vmem>>, vector<4x128xf32>,
    return
  }
  func.func @transform_0(%arg0: i32) -> (i32, i32) {
    %c0_i32 = arith.constant 0 : i32
    %c0_i32_0 = arith.constant 0 : i32
    return %arg0, %c0_i32 : i32, i32
  }
  func.func @transform_1(%arg0: i32) -> (i32, i32) {
    %c0_i32 = arith.constant 0 : i32
    %c0_i32_0 = arith.constant 0 : i32
    %c0_i32_1 = arith.constant 0 : i32
    return %c0_i32, %c0_i32_0 : i32, i32
  }
  func.func @transform_2(%arg0: i32) -> (i32, i32) {
    %c0_i32 = arith.constant 0 : i32
    %c0_i32_0 = arith.constant 0 : i32
    return %arg0, %c0_i32 : i32, i32
  }
}

</mosaic_0001>

<llo_original>
// kernel: tpu_custom_call.1
$region0: #{tpu_custom_call.1}
  #allocation0 [shape = 'u32[]', space=smem, size = 0x4, offset = 0x4, fixed_abs, tag = 'smem constant byte address 0x4 - core index']
  #allocation1 [shape = 'u32[144,128]{1,0:T(1,128)}', space=vmem, size = 0x12000, scoped, tag = 'internal scratch']
  %s0 = inlined_call_operand.hbm [shape: f32[4,128], index: 0, kind: input, shape index: {}]
  %s1 = inlined_call_operand.hbm [shape: f32[128,128], index: 1, kind: input, shape index: {}]
  %s2 = inlined_call_operand.hbm [shape: f32[4,128], index: 2, kind: output, shape index: {}]
  %s3 = sld [smem:[#allocation0]]
  $region26: #{tpu_custom_call.1} parent=0
    _
  %s5 = ssub.s32 1, %s3
  %s6 = scalar_select 0, %s5, %s3
  $region1: #{tpu_custom_call.1} parent=0
    #allocation2 [shape = 'u8[2048]{0}', space=vmem, size = 0x800, scoped, tag = 'input window, operand 0, single buffered']
    #allocation3 [shape = 's32[1]{0}', space=sflag, size = 0x4, scoped, tag = 'scoped memory for tpu_custom_call.1']
    #allocation4 [shape = 's32[1]{0}', space=sflag, size = 0x4, scoped, tag = 'scoped memory for tpu_custom_call.1']
    #allocation5 [shape = 'u8[65536]{0}', space=vmem, size = 0x10000, scoped, tag = 'input window, operand 1, single buffered']
    #allocation6 [shape = 's32[1]{0}', space=sflag, size = 0x4, scoped, tag = 'scoped memory for tpu_custom_call.1']
    #allocation7 [shape = 'u8[2048]{0}', space=vmem, size = 0x800, scoped, tag = 'output window, operand 0, single buffered']
    %7 = vsyncpa [#allocation3], 0
    %8 = vsyncpa [#allocation6], 0
    %9 = vsyncpa [#allocation4], 0
    // Predicated region
    $region2: #{tpu_custom_call.1} parent=1 // pred_check
      _
    $region3: #{tpu_custom_call.1} parent=1 // pred_check_branch
      %11 = sbr.rel (0) target = $region5
    $region4: #{tpu_custom_call.1} parent=1 // pred_region
      %s13 = ssub.s32 64, 64
      %14 = vsyncadd [#allocation3], %s13
      %s16 = sshll.u32 [#allocation2], 4
      %s17 = int_to_ptr.vmem [resolvable:$true] %s16
      %19 = dma.hbm_to_vmem [thread:$0]  %s0, 64, %s17, [#allocation3]
    $region5: #{tpu_custom_call.1} parent=1 // pred_fallthru
      _
    // Predicated region
    $region6: #{tpu_custom_call.1} parent=1 // pred_check
      _
    $region7: #{tpu_custom_call.1} parent=1 // pred_check_branch
      %21 = sbr.rel (0) target = $region9
    $region8: #{tpu_custom_call.1} parent=1 // pred_region
      %s23 = ssub.s32 2048, 2048
      %24 = vsyncadd [#allocation6], %s23
      %s25 = sshll.u32 [#allocation5], 4
      %s26 = int_to_ptr.vmem [resolvable:$true] %s25
      %31 = dma.hbm_to_vmem [thread:$0]  %s1, 2048, %s26, [#allocation6], 128, 128, 8
    $region9: #{tpu_custom_call.1} parent=1 // pred_fallthru
      _
    // Predicated region
    $region10: #{tpu_custom_call.1} parent=1 // pred_check
      _
    $region11: #{tpu_custom_call.1} parent=1 // pred_check_branch
      %33 = sbr.rel (0) target = $region13
    $region12: #{tpu_custom_call.1} parent=1 // pred_region
      %34 = dma.done [#allocation3], 64
    $region13: #{tpu_custom_call.1} parent=1 // pred_fallthru
      _
    // Predicated region
    $region14: #{tpu_custom_call.1} parent=1 // pred_check
      _
    $region15: #{tpu_custom_call.1} parent=1 // pred_check_branch
      %36 = sbr.rel (0) target = $region17
    $region16: #{tpu_custom_call.1} parent=1 // pred_region
      %37 = dma.done [#allocation6], 2048
    $region17: #{tpu_custom_call.1} parent=1 // pred_fallthru
      _
    %v38 = vld [vmem:[#allocation2] sm:$0xf]
    %v39 = vmul.f32 %v38, %v38
    %v40 = vld [vmem:[#allocation5] sm:$0xff]
    %v41 = vld [vmem:[#allocation5 + $0x8] sm:$0xff]
    %v42 = vld [vmem:[#allocation5 + $0x10] sm:$0xff]
    %v43 = vld [vmem:[#allocation5 + $0x18] sm:$0xff]
    %v44 = vld [vmem:[#allocation5 + $0x20] sm:$0xff]
    %v45 = vld [vmem:[#allocation5 + $0x28] sm:$0xff]
    %v46 = vld [vmem:[#allocation5 + $0x30] sm:$0xff]
    %v47 = vld [vmem:[#allocation5 + $0x38] sm:$0xff]
    %v48 = vld [vmem:[#allocation5 + $0x40] sm:$0xff]
    %v49 = vld [vmem:[#allocation5 + $0x48] sm:$0xff]
    %v50 = vld [vmem:[#allocation5 + $0x50] sm:$0xff]
    %v51 = vld [vmem:[#allocation5 + $0x58] sm:$0xff]
    %v52 = vld [vmem:[#allocation5 + $0x60] sm:$0xff]
    %v53 = vld [vmem:[#allocation5 + $0x68] sm:$0xff]
    %v54 = vld [vmem:[#allocation5 + $0x70] sm:$0xff]
    %v55 = vld [vmem:[#allocation5 + $0x78] sm:$0xff]
    %56 = vmatprep.subr.mxu0 0.0
    %57 = vmatpush1.msra.mxu0 %v55
    %58 = vmatprep.subr.mxu0 0.0
    %59 = vmatpush1.msra.mxu0 %v54
    %60 = vmatprep.subr.mxu0 0.0
    %61 = vmatpush1.msra.mxu0 %v53
    %62 = vmatprep.subr.mxu0 0.0
    %63 = vmatpush1.msra.mxu0 %v52
    %64 = vmatprep.subr.mxu0 0.0
    %65 = vmatpush1.msra.mxu0 %v51
    %66 = vmatprep.subr.mxu0 0.0
    %67 = vmatpush1.msra.mxu0 %v50
    %68 = vmatprep.subr.mxu0 0.0
    %69 = vmatpush1.msra.mxu0 %v49
    %70 = vmatprep.subr.mxu0 0.0
    %71 = vmatpush1.msra.mxu0 %v48
    %72 = vmatprep.subr.mxu0 0.0
    %73 = vmatpush1.msra.mxu0 %v47
    %74 = vmatprep.subr.mxu0 0.0
    %75 = vmatpush1.msra.mxu0 %v46
    %76 = vmatprep.subr.mxu0 0.0
    %77 = vmatpush1.msra.mxu0 %v45
    %78 = vmatprep.subr.mxu0 0.0
    %79 = vmatpush1.msra.mxu0 %v44
    %80 = vmatprep.subr.mxu0 0.0
    %81 = vmatpush1.msra.mxu0 %v43
    %82 = vmatprep.subr.mxu0 0.0
    %83 = vmatpush1.msra.mxu0 %v42
    %84 = vmatprep.subr.mxu0 0.0
    %85 = vmatpush1.msra.mxu0 %v41
    %86 = vmatprep.subr.mxu0 0.0
    %87 = vmatpush1.msra.mxu0 %v40
    %88 = vmatprep.subr.mxu0 0.0
    %89 = vmatpush2.msra.mxu0 0.0
    %90 = vmatprep.subr.mxu0 0.0
    %91 = vmatpush2.msra.mxu0 0.0
    %92 = vmatprep.subr.mxu0 0.0
    %93 = vmatpush2.msra.mxu0 0.0
    %94 = vmatprep.subr.mxu0 0.0
    %95 = vmatpush2.msra.mxu0 0.0
    %96 = vmatprep.subr.mxu0 0.0
    %97 = vmatpush2.msra.mxu0 0.0
    %98 = vmatprep.subr.mxu0 0.0
    %99 = vmatpush2.msra.mxu0 0.0
    %100 = vmatprep.subr.mxu0 0.0
    %101 = vmatpush2.msra.mxu0 0.0
    %102 = vmatprep.subr.mxu0 0.0
    %103 = vmatpush2.msra.mxu0 0.0
    %104 = vmatprep.subr.mxu0 0.0
    %105 = vmatpush2.msra.mxu0 0.0
    %106 = vmatprep.subr.mxu0 0.0
    %107 = vmatpush2.msra.mxu0 0.0
    %108 = vmatprep.subr.mxu0 0.0
    %109 = vmatpush2.msra.mxu0 0.0
    %110 = vmatprep.subr.mxu0 0.0
    %111 = vmatpush2.msra.mxu0 0.0
    %112 = vmatprep.subr.mxu0 0.0
    %113 = vmatpush2.msra.mxu0 0.0
    %114 = vmatprep.subr.mxu0 0.0
    %115 = vmatpush2.msra.mxu0 0.0
    %116 = vmatprep.subr.mxu0 0.0
    %117 = vmatpush2.msra.mxu0 0.0
    %118 = vmatprep.subr.mxu0 0.0
    %119 = vmatpush2.msra.mxu0 0.0
    %120 = vmatprep.mubr.f32.mxu0 0.0
    %121 = vmatmul.mubr.f32.gmra.mxu0 %v39
    %v122 = vpop.f32.mrf.mxu0
    %v123 = vadd.f32 0.0, %v122
    %v124 = vpop.f32.mrf.mxu0
    %125 = vdwg.mxu0
    %v126 = vrsqrt.pop %v123
    %v127 = vmul.f32 %v123, %v126
    %vm128 = vcmp.eq.f32.partialorder %v123, inf
    %v129 = vsel %vm128, %v123, %v127
    %vm130 = vcmp.eq.f32.partialorder %v123, 0.0
    %v131 = vand.u32 %v123, 2147483648
    %v132 = vsel %vm130, %v131, %v129
    %v133 = vadd.f32 %v132, 1e-06
    %v134 = vrcp.pop %v133
    %v135 = vmul.f32 %v38, %v134
    %136 = vst [vmem:[#allocation7] sm:$0xf] %v135
    // Predicated region
    $region18: #{tpu_custom_call.1} parent=1 // pred_check
      _
    $region19: #{tpu_custom_call.1} parent=1 // pred_check_branch
      %138 = sbr.rel (0) target = $region21
    $region20: #{tpu_custom_call.1} parent=1 // pred_region
      %s140 = ssub.s32 64, 64
      %141 = vsyncadd [#allocation4], %s140
      %s143 = sshll.u32 [#allocation7], 4
      %s144 = int_to_ptr.vmem [resolvable:$true] %s143
      %146 = dma.vmem_to_hbm [thread:$0]  %s144, 64, %s2, [#allocation4]
    $region21: #{tpu_custom_call.1} parent=1 // pred_fallthru
      _
    // Predicated region
    $region22: #{tpu_custom_call.1} parent=1 // pred_check
      _
    $region23: #{tpu_custom_call.1} parent=1 // pred_check_branch
      %148 = sbr.rel (0) target = $region25
    $region24: #{tpu_custom_call.1} parent=1 // pred_region
      %149 = dma.done [#allocation4], 64
    $region25: #{tpu_custom_call.1} parent=1 // pred_fallthru
      _
    %150 = vsyncpa [#allocation3], 1
    %151 = vsyncpa [#allocation6], 1
    %152 = vsyncpa [#allocation4], 1

</llo_original>
